<compile_context>
chip_gen: v7x
topology: tpu7x:2x2x1
jax: 0.10.0
libtpu: 0.0.40
codegen_flags: <defaults>
</compile_context>

<pallas_src>
import jax
import jax.numpy as jnp
from jax.experimental import pallas as pl
from jax.experimental.pallas import tpu as pltpu

HIDDEN = 20
LANE = 128            # TPU lane width
MAX_TILE_B = 8192     # batch elements (lanes) per grid step


def _round_up(n, m):
    return ((n + m - 1) // m) * m


def mlp_kernel(x_ref, w1_ref, b1_ref, w2_ref, b2_ref, w3_ref, b3_ref, o_ref):
    # x: (1, TILE_B) — batch on the lane axis.
    x = x_ref[...]

    # Layer 1: Linear(1, 20) + ReLU as a VPU broadcast FMA (outer product).
    # (20,1) * (1,TILE_B) + (20,1)  ->  (20, TILE_B)
    h1 = jnp.maximum(w1_ref[...] * x + b1_ref[...], 0.0)

    # Layer 2: Linear(20, 20) + Tanh on the MXU, batch on the result lanes.
    # (20,20) @ (20,TILE_B) -> (20, TILE_B)
    h2 = jnp.tanh(
        jnp.dot(w2_ref[...], h1, preferred_element_type=jnp.float32)
        + b2_ref[...]
    )

    # Layer 3: Linear(20, 1) as a VPU multiply + sublane reduce (no MXU).
    # sum_j w3[j] * h2[j, :]  ->  (1, TILE_B); bias comes from SMEM scalar.
    out = jnp.sum(w3_ref[...] * h2, axis=0, keepdims=True) + b3_ref[0, 0]

    o_ref[...] = out.astype(o_ref.dtype)


def mlp_forward(x, params):
    """x: (N, 1) float32 (PyTorch's x.view(-1, 1)). Returns (N, 1) float32."""
    w1, b1, w2, b2, w3, b3 = params
    n = x.shape[0]

    # Lane-dense layout: flatten the batch onto the lane axis.
    tile_b = min(MAX_TILE_B, _round_up(max(n, 1), LANE))
    n_pad = _round_up(n, tile_b)
    x_row = jnp.pad(x.reshape(-1), (0, n_pad - n)).reshape(1, n_pad)

    grid = (n_pad // tile_b,)

    def full(a):  # whole (tiny) weight resident in VMEM every step
        return pl.BlockSpec(a.shape, lambda i: (0, 0))

    out = pl.pallas_call(
        mlp_kernel,
        out_shape=jax.ShapeDtypeStruct((1, n_pad), jnp.float32),
        grid_spec=pltpu.PrefetchScalarGridSpec(
            num_scalar_prefetch=0,
            grid=grid,
            in_specs=[
                pl.BlockSpec((1, tile_b), lambda i: (0, i)),  # x tile (lane-dense)
                full(w1), full(b1),                           # (20,1), (20,1)
                full(w2), full(b2),                           # (20,20), (20,1)
                full(w3),                                     # (20,1)
                pl.BlockSpec(memory_space=pltpu.MemorySpace.SMEM),  # b3 scalar
            ],
            out_specs=pl.BlockSpec((1, tile_b), lambda i: (0, i)),
        ),
        compiler_params=pltpu.CompilerParams(
            dimension_semantics=("parallel",)),
    )(x_row, w1, b1, w2, b2, w3, b3)

    # Back to the module's (N, 1) output shape; padded lanes are discarded.
    return out[0, :n].reshape(-1, 1)


def init_params(key):
    """Deterministic init mimicking torch.nn.Linear default
    (U[-1/sqrt(fan_in), 1/sqrt(fan_in)]). Stored in 'y = W x' orientation."""
    ks = jax.random.split(key, 6)

    def linear(kw, kb, fan_in, fan_out):
        bound = fan_in ** -0.5
        w = jax.random.uniform(kw, (fan_out, fan_in), jnp.float32, -bound, bound)
        b = jax.random.uniform(kb, (fan_out, 1), jnp.float32, -bound, bound)
        return w, b

    w1, b1 = linear(ks[0], ks[1], 1, HIDDEN)       # (20,1), (20,1)
    w2, b2 = linear(ks[2], ks[3], HIDDEN, HIDDEN)  # (20,20), (20,1)
    w3, b3 = linear(ks[4], ks[5], HIDDEN, 1)       # (1,20), (1,1)
    w3c = w3.T                                     # (20,1) column for the VPU path
    return (w1, b1, w2, b2, w3c, b3)


def reference_forward(x, params):
    """Pure-JAX reference matching torch semantics: y = x @ W.T + b."""
    w1, b1, w2, b2, w3c, b3 = params
    h1 = jnp.maximum(x @ w1.T + b1.T, 0.0)
    h2 = jnp.tanh(h1 @ w2.T + b2.T)
    return h2 @ w3c + b3


if __name__ == "__main__":
    key = jax.random.PRNGKey(0)
    k_param, k_x = jax.random.split(key)

    params = init_params(k_param)

    # Small batch of scalar inputs, reshaped to (-1, 1) as in the PyTorch script.
    n_samples = 8
    x_raw = jax.random.normal(k_x, (n_samples,), jnp.float32)
    x = x_raw.reshape(-1, 1)  # (8, 1)

    out = mlp_forward(x, params)
    out = jax.block_until_ready(out)

    ref = reference_forward(x, params)
    assert out.shape == (n_samples, 1)
    assert jnp.allclose(out, ref, atol=1e-5, rtol=1e-5)

    print("KERNEL_OK")
</pallas_src>

<mosaic_0001>
module attributes {stable_mosaic.version = 11 : i64} {
  func.func @mlp_kernel(%arg0: i32, %arg1: memref<1x128xf32, #tpu.memory_space<vmem>>, %arg2: memref<20x1xf32, #tpu.memory_space<vmem>>, %arg3: memref<20x1xf32, #tpu.memory_space<vmem>>, %arg4: memref<20x20xf32, #tpu.memory_space<vmem>>, %arg5: memref<20x1xf32, #tpu.memory_space<vmem>>, %arg6: memref<20x1xf32, #tpu.memory_space<vmem>>, %arg7: memref<1x1xf32, #tpu.memory_space<smem>>, %arg8: memref<1x128xf32, #tpu.memory_space<vmem>>) attributes {dimension_semantics = [#tpu.dimension_semantics<parallel>], iteration_bounds = array<i64: 1>, scalar_prefetch = 0 : i64, scratch_operands = 0 : i64, tpu.core_type = #tpu.core_type<tc>, window_params = [{transform_indices = @transform_0, window_bounds = array<i64: 1, 128>}, {pipeline_mode = #tpu.pipeline_mode<synchronous>, transform_indices = @transform_1, window_bounds = array<i64: 20, 1>}, {pipeline_mode = #tpu.pipeline_mode<synchronous>, transform_indices = @transform_2, window_bounds = array<i64: 20, 1>}, {pipeline_mode = #tpu.pipeline_mode<synchronous>, transform_indices = @transform_3, window_bounds = array<i64: 20, 20>}, {pipeline_mode = #tpu.pipeline_mode<synchronous>, transform_indices = @transform_4, window_bounds = array<i64: 20, 1>}, {pipeline_mode = #tpu.pipeline_mode<synchronous>, transform_indices = @transform_5, window_bounds = array<i64: 20, 1>}, {transform_indices = @transform_6, window_bounds = array<i64: 1, 1>}, {transform_indices = @transform_7, window_bounds = array<i64: 1, 128>}]} {
    %c0 = arith.constant 0 : index
    %c0_0 = arith.constant 0 : index
    %0 = vector.load %arg1[%c0, %c0_0] : memref<1x128xf32, #tpu.memory_space<vmem>>, vector<1x128xf32>
    %c0_1 = arith.constant 0 : index
    %c0_2 = arith.constant 0 : index
    %1 = vector.load %arg2[%c0_1, %c0_2] : memref<20x1xf32, #tpu.memory_space<vmem>>, vector<20x1xf32>
    %2 = vector.broadcast %1 : vector<20x1xf32> to vector<20x128xf32>
    %3 = vector.broadcast %0 : vector<1x128xf32> to vector<20x128xf32>
    %4 = arith.mulf %2, %3 : vector<20x128xf32>
    %c0_3 = arith.constant 0 : index
    %c0_4 = arith.constant 0 : index
    %5 = vector.load %arg3[%c0_3, %c0_4] : memref<20x1xf32, #tpu.memory_space<vmem>>, vector<20x1xf32>
    %6 = vector.broadcast %5 : vector<20x1xf32> to vector<20x128xf32>
    %7 = arith.addf %4, %6 : vector<20x128xf32>
    %cst = arith.constant 0.000000e+00 : f32
    %8 = vector.broadcast %cst : f32 to vector<20x128xf32>
    %9 = arith.maximumf %7, %8 : vector<20x128xf32>
    %c0_5 = arith.constant 0 : index
    %c0_6 = arith.constant 0 : index
    %10 = vector.load %arg4[%c0_5, %c0_6] : memref<20x20xf32, #tpu.memory_space<vmem>>, vector<20x20xf32>
    %cst_7 = arith.constant dense<0.000000e+00> : vector<20x128xf32>
    %11 = tpu.matmul %10, %9, %cst_7 {dimension_numbers = #tpu.dot_dimension_numbers<[1], [0], [0], [1], [0, 0, 1, 1], [], []>} : vector<20x20xf32>, vector<20x128xf32>, vector<20x128xf32> -> vector<20x128xf32>
    %c0_8 = arith.constant 0 : index
    %c0_9 = arith.constant 0 : index
    %12 = vector.load %arg5[%c0_8, %c0_9] : memref<20x1xf32, #tpu.memory_space<vmem>>, vector<20x1xf32>
    %13 = vector.broadcast %12 : vector<20x1xf32> to vector<20x128xf32>
    %14 = arith.addf %11, %13 : vector<20x128xf32>
    %15 = math.tanh %14 : vector<20x128xf32>
    %c0_10 = arith.constant 0 : index
    %c0_11 = arith.constant 0 : index
    %16 = vector.load %arg6[%c0_10, %c0_11] : memref<20x1xf32, #tpu.memory_space<vmem>>, vector<20x1xf32>
    %17 = vector.broadcast %16 : vector<20x1xf32> to vector<20x128xf32>
    %18 = arith.mulf %17, %15 : vector<20x128xf32>
    %cst_12 = arith.constant dense<0.000000e+00> : vector<128xf32>
    %19 = vector.multi_reduction <add>, %18, %cst_12 [0] : vector<20x128xf32> to vector<128xf32>
    %20 = vector.shape_cast %19 : vector<128xf32> to vector<1x128xf32>
    %c0_13 = arith.constant 0 : index
    %c0_14 = arith.constant 0 : index
    %21 = memref.load %arg7[%c0_13, %c0_14] : memref<1x1xf32, #tpu.memory_space<smem>>
    %22 = vector.broadcast %21 : f32 to vector<1x128xf32>
    %23 = arith.addf %20, %22 : vector<1x128xf32>
    %c0_15 = arith.constant 0 : index
    %c0_16 = arith.constant 0 : index
    %24 = vector.load %arg8[%c0_15, %c0_16] : memref<1x128xf32, #tpu.memory_space<vmem>>, vector<1x128xf32>
    tpu.vector_store %arg8[%c0_15, %c0_16], %23 {strides = array<i32>} : memref<1x128xf32, #tpu.memory_space<vmem>>, vector<1x128xf32>,
    return
  }
  func.func @transform_0(%arg0: i32) -> (i32, i32) {
    %c0_i32 = arith.constant 0 : i32
    %c0_i32_0 = arith.constant 0 : i32
    return %c0_i32, %arg0 : i32, i32
  }
  func.func @transform_1(%arg0: i32) -> (i32, i32) {
    %c0_i32 = arith.constant 0 : i32
    %c0_i32_0 = arith.constant 0 : i32
    %c0_i32_1 = arith.constant 0 : i32
    return %c0_i32, %c0_i32_0 : i32, i32
  }
  func.func @transform_2(%arg0: i32) -> (i32, i32) {
    %c0_i32 = arith.constant 0 : i32
    %c0_i32_0 = arith.constant 0 : i32
    %c0_i32_1 = arith.constant 0 : i32
    return %c0_i32, %c0_i32_0 : i32, i32
  }
  func.func @transform_3(%arg0: i32) -> (i32, i32) {
    %c0_i32 = arith.constant 0 : i32
    %c0_i32_0 = arith.constant 0 : i32
    %c0_i32_1 = arith.constant 0 : i32
    return %c0_i32, %c0_i32_0 : i32, i32
  }
  func.func @transform_4(%arg0: i32) -> (i32, i32) {
    %c0_i32 = arith.constant 0 : i32
    %c0_i32_0 = arith.constant 0 : i32
    %c0_i32_1 = arith.constant 0 : i32
    return %c0_i32, %c0_i32_0 : i32, i32
  }
  func.func @transform_5(%arg0: i32) -> (i32, i32) {
    %c0_i32 = arith.constant 0 : i32
    %c0_i32_0 = arith.constant 0 : i32
    %c0_i32_1 = arith.constant 0 : i32
    return %c0_i32, %c0_i32_0 : i32, i32
  }
  func.func @transform_6(%arg0: i32) -> (i32, i32) {
    %c0_i32 = arith.constant 0 : i32
    %c0_i32_0 = arith.constant 0 : i32
    %c0_i32_1 = arith.constant 0 : i32
    return %c0_i32, %c0_i32_0 : i32, i32
  }
  func.func @transform_7(%arg0: i32) -> (i32, i32) {
    %c0_i32 = arith.constant 0 : i32
    %c0_i32_0 = arith.constant 0 : i32
    return %c0_i32, %arg0 : i32, i32
  }
}

</mosaic_0001>

<llo_original>
// kernel: tpu_custom_call.1
$region0: #{tpu_custom_call.1}
  #allocation0 [shape = 'u32[]', space=smem, size = 0x4, offset = 0x4, fixed_abs, tag = 'smem constant byte address 0x4 - core index']
  #allocation1 [shape = 'u32[144,128]{1,0:T(1,128)}', space=vmem, size = 0x12000, scoped, tag = 'internal scratch']
  #allocation2 [shape = 'f32[1,1]{1,0:T(1,128)S(6)}', space=smem, size = 0x200, scoped, tag = 'scoped memory for tpu_custom_call.1']
  %s0 = inlined_call_operand.vmem [shape: f32[1,128], index: 0, kind: input, shape index: {}]
  %s1 = inlined_call_operand.vmem [shape: f32[20,1], index: 1, kind: input, shape index: {}]
  %s2 = inlined_call_operand.vmem [shape: f32[20,1], index: 2, kind: input, shape index: {}]
  %s3 = inlined_call_operand.vmem [shape: f32[20,20], index: 3, kind: input, shape index: {}]
  %s4 = inlined_call_operand.vmem [shape: f32[20,1], index: 4, kind: input, shape index: {}]
  %s5 = inlined_call_operand.vmem [shape: f32[20,1], index: 5, kind: input, shape index: {}]
  %s6 = inlined_call_operand.<no memory space> [shape: f32[1,1], index: 6, kind: input, shape index: {}]
  %s7 = inlined_call_operand.hbm [shape: f32[1,128], index: 7, kind: output, shape index: {}]
  %s8 = sld [smem:[#allocation0]]
  $region38: #{tpu_custom_call.1} parent=0
    _
  %s10 = ssub.s32 1, %s8
  %s11 = scalar_select 0, %s10, %s8
  %12 = sst [smem:[#allocation2]] %s6
  $region1: #{tpu_custom_call.1} parent=0
    #allocation3 [shape = 'u8[512]{0}', space=vmem, size = 0x400, scoped, tag = 'output window, operand 0, single buffered']
    #allocation4 [shape = 's32[1]{0}', space=sflag, size = 0x4, scoped, tag = 'scoped memory for tpu_custom_call.1']
    %13 = vsyncpa [#allocation4], 0
    // Predicated region
    $region2: #{tpu_custom_call.1} parent=1 // pred_check
      _
    $region3: #{tpu_custom_call.1} parent=1 // pred_check_branch
      %15 = sbr.rel (0) target = $region5
    $region4: #{tpu_custom_call.1} parent=1 // pred_region
      _
    $region5: #{tpu_custom_call.1} parent=1 // pred_fallthru
      _
    // Predicated region
    $region6: #{tpu_custom_call.1} parent=1 // pred_check
      _
    $region7: #{tpu_custom_call.1} parent=1 // pred_check_branch
      %17 = sbr.rel (0) target = $region9
    $region8: #{tpu_custom_call.1} parent=1 // pred_region
      _
    $region9: #{tpu_custom_call.1} parent=1 // pred_fallthru
      _
    // Predicated region
    $region10: #{tpu_custom_call.1} parent=1 // pred_check
      _
    $region11: #{tpu_custom_call.1} parent=1 // pred_check_branch
      %19 = sbr.rel (0) target = $region13
    $region12: #{tpu_custom_call.1} parent=1 // pred_region
      _
    $region13: #{tpu_custom_call.1} parent=1 // pred_fallthru
      _
    // Predicated region
    $region14: #{tpu_custom_call.1} parent=1 // pred_check
      _
    $region15: #{tpu_custom_call.1} parent=1 // pred_check_branch
      %21 = sbr.rel (0) target = $region17
    $region16: #{tpu_custom_call.1} parent=1 // pred_region
      _
    $region17: #{tpu_custom_call.1} parent=1 // pred_fallthru
      _
    // Predicated region
    $region18: #{tpu_custom_call.1} parent=1 // pred_check
      _
    $region19: #{tpu_custom_call.1} parent=1 // pred_check_branch
      %23 = sbr.rel (0) target = $region21
    $region20: #{tpu_custom_call.1} parent=1 // pred_region
      _
    $region21: #{tpu_custom_call.1} parent=1 // pred_fallthru
      _
    // Predicated region
    $region22: #{tpu_custom_call.1} parent=1 // pred_check
      _
    $region23: #{tpu_custom_call.1} parent=1 // pred_check_branch
      %25 = sbr.rel (0) target = $region25
    $region24: #{tpu_custom_call.1} parent=1 // pred_region
      _
    $region25: #{tpu_custom_call.1} parent=1 // pred_fallthru
      _
    // Predicated region
    $region26: #{tpu_custom_call.1} parent=1 // pred_check
      _
    $region27: #{tpu_custom_call.1} parent=1 // pred_check_branch
      %27 = sbr.rel (0) target = $region29
    $region28: #{tpu_custom_call.1} parent=1 // pred_region
      _
    $region29: #{tpu_custom_call.1} parent=1 // pred_fallthru
      _
    %v28 = vld [vmem:[%s0] sm:$0x1]
    %v29 = vld [vmem:[%s1] sm:$0xff]
    %v30 = vld [vmem:[%s1 + $0x8] sm:$0xff]
    %v31 = vld [vmem:[%s1 + $0x10] sm:$0xf]
    %33 = vset.pattern.permute.xlu0 0
    %34 = vperm.xlu0 %33, %v29
    %v35 = vpop.permute.xlu0 %34
    %38 = vset.pattern.permute.xlu0 0
    %39 = vperm.xlu0 %38, %v30
    %v40 = vpop.permute.xlu0 %39
    %43 = vset.pattern.permute.xlu0 0
    %44 = vperm.xlu0 %43, %v31
    %v45 = vpop.permute.xlu0 %44
    %v48 = vlaneseq
    %v49 = vshrl.u32 %v48, 7
    %v50 = vsub.s32 0, %v49
    %v51 = vrot.slane %v28, %v50
    %v53 = vmul.f32 %v35, %v51
    %v54 = vmul.f32 %v40, %v51
    %v55 = vmul.f32 %v45, %v51
    %v56 = vld [vmem:[%s2] sm:$0xff]
    %v57 = vld [vmem:[%s2 + $0x8] sm:$0xff]
    %v58 = vld [vmem:[%s2 + $0x10] sm:$0xf]
    %60 = vset.pattern.permute.xlu0 0
    %61 = vperm.xlu0 %60, %v56
    %v62 = vpop.permute.xlu0 %61
    %65 = vset.pattern.permute.xlu0 0
    %66 = vperm.xlu0 %65, %v57
    %v67 = vpop.permute.xlu0 %66
    %70 = vset.pattern.permute.xlu0 0
    %71 = vperm.xlu0 %70, %v58
    %v72 = vpop.permute.xlu0 %71
    %v74 = vadd.f32 %v53, %v62
    %v75 = vadd.f32 %v54, %v67
    %v76 = vadd.f32 %v55, %v72
    %v77 = vmax.f32 %v74, 0.0
    %v78 = vmax.f32 %v75, 0.0
    %v79 = vmax.f32 %v76, 0.0
    %v80 = vld [vmem:[%s3] sm:$0xff]
    %v81 = vld [vmem:[%s3 + $0x8] sm:$0xff]
    %v82 = vld [vmem:[%s3 + $0x10] sm:$0xf]
    %v83 = vld [vmem:[%s4] sm:$0xff]
    %v84 = vld [vmem:[%s4 + $0x8] sm:$0xff]
    %v85 = vld [vmem:[%s4 + $0x10] sm:$0xf]
    %87 = vset.pattern.permute.xlu0 0
    %88 = vperm.xlu0 %87, %v83
    %v89 = vpop.permute.xlu0 %88
    %92 = vset.pattern.permute.xlu0 0
    %93 = vperm.xlu0 %92, %v84
    %v94 = vpop.permute.xlu0 %93
    %97 = vset.pattern.permute.xlu0 0
    %98 = vperm.xlu0 %97, %v85
    %v99 = vpop.permute.xlu0 %98
    %vm101 = vcmask 162816
    %v103 = vsel %vm101, %v80, 0
    %v106 = vsel %vm101, %v81, 0
    %v109 = vsel %vm101, %v82, 0
    %vm111 = vcmask 1043456
    %v113 = vsel %vm111, %v79, 0
    %115 = vmatprep.subr.mxu0 0.0
    %116 = vmatpush1.msra.mxu0 %v77
    %117 = vmatprep.subr.mxu0 0.0
    %118 = vmatpush1.msra.mxu0 %v78
    %119 = vmatprep.subr.mxu0 0.0
    %120 = vmatpush1.msra.mxu0 %v113
    %121 = vmatprep.subr.mxu0 0.0
    %122 = vmatpush1.msra.mxu0 0.0
    %123 = vmatprep.subr.mxu0 0.0
    %124 = vmatpush1.msra.mxu0 0.0
    %125 = vmatprep.subr.mxu0 0.0
    %126 = vmatpush1.msra.mxu0 0.0
    %127 = vmatprep.subr.mxu0 0.0
    %128 = vmatpush1.msra.mxu0 0.0
    %129 = vmatprep.subr.mxu0 0.0
    %130 = vmatpush1.msra.mxu0 0.0
    %131 = vmatprep.subr.mxu0 0.0
    %132 = vmatpush1.msra.mxu0 0.0
    %133 = vmatprep.subr.mxu0 0.0
    %134 = vmatpush1.msra.mxu0 0.0
    %135 = vmatprep.subr.mxu0 0.0
    %136 = vmatpush1.msra.mxu0 0.0
    %137 = vmatprep.subr.mxu0 0.0
    %138 = vmatpush1.msra.mxu0 0.0
    %139 = vmatprep.subr.mxu0 0.0
    %140 = vmatpush1.msra.mxu0 0.0
    %141 = vmatprep.subr.mxu0 0.0
    %142 = vmatpush1.msra.mxu0 0.0
    %143 = vmatprep.subr.mxu0 0.0
    %144 = vmatpush1.msra.mxu0 0.0
    %145 = vmatprep.subr.mxu0 0.0
    %146 = vmatpush1.msra.mxu0 0.0
    %147 = vmatprep.subr.mxu0 0.0
    %148 = vmatpush1.msra.mxu0 0.0
    %149 = vmatprep.subr.mxu0 0.0
    %150 = vmatpush1.msra.mxu0 0.0
    %151 = vmatprep.subr.mxu0 0.0
    %152 = vmatpush1.msra.mxu0 0.0
    %153 = vmatprep.subr.mxu0 0.0
    %154 = vmatpush1.msra.mxu0 0.0
    %155 = vmatprep.subr.mxu0 0.0
    %156 = vmatpush1.msra.mxu0 0.0
    %157 = vmatprep.subr.mxu0 0.0
    %158 = vmatpush1.msra.mxu0 0.0
    %159 = vmatprep.subr.mxu0 0.0
    %160 = vmatpush1.msra.mxu0 0.0
    %161 = vmatprep.subr.mxu0 0.0
    %162 = vmatpush1.msra.mxu0 0.0
    %163 = vmatprep.subr.mxu0 0.0
    %164 = vmatpush1.msra.mxu0 0.0
    %165 = vmatprep.subr.mxu0 0.0
    %166 = vmatpush1.msra.mxu0 0.0
    %167 = vmatprep.subr.mxu0 0.0
    %168 = vmatpush1.msra.mxu0 0.0
    %169 = vmatprep.subr.mxu0 0.0
    %170 = vmatpush1.msra.mxu0 0.0
    %171 = vmatprep.subr.mxu0 0.0
    %172 = vmatpush1.msra.mxu0 0.0
    %173 = vmatprep.subr.mxu0 0.0
    %174 = vmatpush1.msra.mxu0 0.0
    %175 = vmatprep.subr.mxu0 0.0
    %176 = vmatpush1.msra.mxu0 0.0
    %177 = vmatprep.subr.mxu0 0.0
    %178 = vmatpush1.msra.mxu0 0.0
    %179 = vmatprep.mubr.f32.mxu0 0.0
    %180 = vmatmul.mubr.f32.gmra.mrb[0].mxu0 %v103
    %v181 = vpop.f32.mrb[0].mxu0
    %v182 = vadd.f32 %v89, %v181
    %v183 = vpop.f32.mrb[0].mxu0
    %184 = vmatprep.mubr.f32.mxu0 0.0
    %185 = vmatmul.mubr.f32.gmra.mrb[0].mxu0 %v106
    %v186 = vpop.f32.mrb[0].mxu0
    %v187 = vadd.f32 %v94, %v186
    %v188 = vpop.f32.mrb[0].mxu0
    %189 = vmatprep.mubr.f32.mxu0 0.0
    %190 = vmatmul.mubr.f32.gmra.mrb[0].mxu0 %v109
    %v191 = vpop.f32.mrb[0].mxu0
    %v192 = vadd.f32 %v99, %v191
    %v193 = vpop.f32.mrb[0].mxu0
    %194 = vdwg.mxu0
    %v195 = vtanh.pop %v182
    %v196 = vtanh.pop %v187
    %v197 = vtanh.pop %v192
    %v198 = vld [vmem:[%s5] sm:$0xff]
    %v199 = vld [vmem:[%s5 + $0x8] sm:$0xff]
    %v200 = vld [vmem:[%s5 + $0x10] sm:$0xf]
    %202 = vset.pattern.permute.xlu0 0
    %203 = vperm.xlu0 %202, %v198
    %v204 = vpop.permute.xlu0 %203
    %207 = vset.pattern.permute.xlu0 0
    %208 = vperm.xlu0 %207, %v199
    %v209 = vpop.permute.xlu0 %208
    %212 = vset.pattern.permute.xlu0 0
    %213 = vperm.xlu0 %212, %v200
    %v214 = vpop.permute.xlu0 %213
    %v216 = vmul.f32 %v204, %v195
    %v217 = vmul.f32 %v209, %v196
    %v218 = vmul.f32 %v214, %v197
    %v219 = vadd.f32 %v216, %v217
    %v220 = vsel %vm111, %v218, 0.0
    %v221 = vadd.f32 %v219, %v220
    %v222 = vrot.slane %v221, 4
    %v223 = vadd.f32 %v221, %v222
    %v224 = vrot.slane %v223, 2
    %v225 = vadd.f32 %v223, %v224
    %v226 = vrot.slane %v225, 1
    %v227 = vadd.f32 %v225, %v226
    %s228 = sld [smem:[#allocation2]]
    %v229 = vstv %s228
    %v230 = vadd.f32 %v227, %v229
    %231 = vst [vmem:[#allocation3] sm:$0x1] %v230
    // Predicated region
    $region30: #{tpu_custom_call.1} parent=1 // pred_check
      _
    $region31: #{tpu_custom_call.1} parent=1 // pred_check_branch
      %233 = sbr.rel (0) target = $region33
    $region32: #{tpu_custom_call.1} parent=1 // pred_region
      %s235 = ssub.s32 16, 16
      %236 = vsyncadd [#allocation4], %s235
      %s238 = sshll.u32 [#allocation3], 4
      %s239 = int_to_ptr.vmem [resolvable:$true] %s238
      %241 = dma.vmem_to_hbm [thread:$0]  %s239, 16, %s7, [#allocation4]
    $region33: #{tpu_custom_call.1} parent=1 // pred_fallthru
      _
    // Predicated region
    $region34: #{tpu_custom_call.1} parent=1 // pred_check
      _
    $region35: #{tpu_custom_call.1} parent=1 // pred_check_branch
      %243 = sbr.rel (0) target = $region37
    $region36: #{tpu_custom_call.1} parent=1 // pred_region
      %244 = dma.done [#allocation4], 16
    $region37: #{tpu_custom_call.1} parent=1 // pred_fallthru
      _
    %245 = vsyncpa [#allocation4], 1

</llo_original>
